<compile_context>
chip_gen: v6e
topology: v6e:2x2x1
jax: 0.10.0
libtpu: 0.0.40
codegen_flags: <defaults>
</compile_context>

<pallas_src>
import jax
import jax.numpy as jnp
from jax.experimental import pallas as pl
from jax.experimental.pallas import tpu as pltpu


def group_mlp_kernel(x_ref, w1_ref, w2_ref, o_ref):
    # x_ref : (M, K)   one group's activations (constant across j, tiny)
    # w1_ref: (K, tj)  column tile j of the first weight
    # w2_ref: (tj, H)  row tile j of the second weight (full output width)
    # o_ref : (M, H)   full-width f32 output block, resident across j
    #                  -> doubles as the accumulator (output dtype is f32).
    j = pl.program_id(1)

    @pl.when(j == 0)
    def _init():
        o_ref[...] = jnp.zeros_like(o_ref)

    # h_j = relu(x @ w1[:, j_tile]); accumulation in f32 on the MXU.
    h = jnp.dot(x_ref[...], w1_ref[...], preferred_element_type=jnp.float32)
    h = jnp.maximum(h, 0.0)

    # Cast h to the streaming dtype of w2 (no-op for f32 inputs) so the
    # second matmul uses the native (e.g. bf16) MXU datapath; accumulate f32.
    o_ref[...] += jnp.dot(
        h.astype(w2_ref.dtype), w2_ref[...], preferred_element_type=jnp.float32
    )


def _vmem_capacity_bytes():
    try:
        info = pltpu.get_tpu_info()
        return int(getattr(info, "vmem_capacity_bytes", 64 * 1024 * 1024))
    except Exception:
        return 64 * 1024 * 1024  # conservative (v7x per-TC VMEM)


def group_gemm_mlp(x, w1, w2, *, block_j=None, vmem_budget_bytes=None):
    """x: (G, M, K), w1: (G, K, H), w2: (G, H, H) -> (G, M, H) float32.

    Inputs are streamed in whatever dtype they are stored in (no per-call
    casts).  For halved weight traffic, pre-cast w1/w2 (and x) to bf16 once
    at init and pass them here.
    """
    G, M, K = x.shape
    _, _, H = w1.shape
    assert w1.shape == (G, K, H) and w2.shape == (G, H, H)

    x_isz = jnp.dtype(x.dtype).itemsize
    w1_isz = jnp.dtype(w1.dtype).itemsize
    w2_isz = jnp.dtype(w2.dtype).itemsize

    # Generation-aware VMEM budget: leave headroom for surrounding fusions.
    vmem_cap = _vmem_capacity_bytes()
    if vmem_budget_bytes is None:
        vmem_budget_bytes = int(vmem_cap * 0.625)  # ~40 MiB on v7x, more on v5e/v6e

    def footprint(tj):
        # Double-buffered x / w1 / w2 input tiles + double-buffered f32 output.
        return (2 * x_isz * M * K
                + 2 * w1_isz * K * tj
                + 2 * w2_isz * tj * H
                + 2 * 4 * M * H)

    # Pick tj: largest 128-multiple divisor of H whose footprint fits budget.
    if block_j is not None:
        tj = block_j
    elif H % 128 != 0 or H <= 128:
        tj = H  # full-extent block (allowed even if not 128-aligned)
    else:
        cands = [t for t in range(H, 0, -128) if H % t == 0]
        tj = cands[-1]
        for t in cands:
            if footprint(t) <= vmem_budget_bytes:
                tj = t
                break
    assert H % tj == 0, "block_j must divide H = 4*hidden"
    if tj != H:
        assert tj % 128 == 0, "block_j must be lane-dense (multiple of 128)"

    grid = (G, H // tj)

    vmem_limit = min(vmem_cap, max(footprint(tj) + (4 << 20), 16 << 20))

    # Each weight element is now read exactly once; activations once; output
    # written once.  FLOPs counted once (no recompute across output tiles).
    cost = pl.CostEstimate(
        flops=2 * G * M * (K * H + H * H),
        transcendentals=0,
        bytes_accessed=G * (x_isz * M * K + w1_isz * K * H + w2_isz * H * H
                            + 4 * M * H),
    )

    return pl.pallas_call(
        group_mlp_kernel,
        out_shape=jax.ShapeDtypeStruct((G, M, H), jnp.float32),
        grid_spec=pltpu.PrefetchScalarGridSpec(
            num_scalar_prefetch=0,
            grid=grid,
            in_specs=[
                # x: full (M, K) per group; block index only depends on g,
                # so it is DMA'd once per group.
                pl.BlockSpec((pl.Squeezed(), M, K), lambda g, j: (g, 0, 0)),
                # w1: column tile j -> each element streamed exactly once.
                pl.BlockSpec((pl.Squeezed(), K, tj), lambda g, j: (g, 0, j)),
                # w2: row tile j, full output width -> exactly once.
                pl.BlockSpec((pl.Squeezed(), tj, H), lambda g, j: (g, j, 0)),
            ],
            # Output block constant across j -> resident f32 accumulator,
            # written back to HBM once per group.
            out_specs=pl.BlockSpec((pl.Squeezed(), M, H),
                                   lambda g, j: (g, 0, 0)),
        ),
        compiler_params=pltpu.CompilerParams(
            # G parallel (megacore shards disjoint weight streams per TC),
            # reduction axis j last and arbitrary.
            dimension_semantics=("parallel", "arbitrary"),
            vmem_limit_bytes=vmem_limit,
        ),
        cost_estimate=cost,
    )(x, w1, w2)


if __name__ == "__main__":
    # Shapes implied by the module's setup:
    #   batch_size = 1 -> num_groups = 1 (bmm batch axis), seq_len = 2,
    #   hidden_dim = 128, intermediate H = 4*hidden = 512.
    num_groups = 1
    seq_len = 2
    hidden = 128
    H = hidden * 4

    key = jax.random.PRNGKey(0)
    kx, kw1, kw2 = jax.random.split(key, 3)

    x = jax.random.normal(kx, (num_groups, seq_len, hidden), dtype=jnp.float32)
    w1 = jax.random.normal(kw1, (num_groups, hidden, H), dtype=jnp.float32)
    w2 = jax.random.normal(kw2, (num_groups, H, H), dtype=jnp.float32)

    # Pure-JAX f32 reference.
    ref = jnp.matmul(jnp.maximum(jnp.matmul(x, w1), 0.0), w2)

    # 1) Exact f32 streaming path with auto tiling (single j step here).
    out = jax.block_until_ready(group_gemm_mlp(x, w1, w2))
    assert out.shape == (num_groups, seq_len, H)
    assert jnp.allclose(out, ref, rtol=1e-4, atol=1e-2), "f32 mismatch vs reference"

    # 2) Small block_j to exercise the multi-step j reduction / accumulator
    #    init + finalize logic.
    out_multi = jax.block_until_ready(group_gemm_mlp(x, w1, w2, block_j=128))
    assert jnp.allclose(out_multi, ref, rtol=1e-4, atol=1e-2), "multi-step mismatch"

    # 3) bf16 weights pre-cast ONCE outside the hot path (halves weight HBM
    #    traffic; no per-call cast inside the wrapper).
    x_b = x.astype(jnp.bfloat16)
    w1_b = w1.astype(jnp.bfloat16)
    w2_b = w2.astype(jnp.bfloat16)
    out_bf16 = jax.block_until_ready(group_gemm_mlp(x_b, w1_b, w2_b))
    rel_err = jnp.linalg.norm(out_bf16 - ref) / jnp.linalg.norm(ref)
    assert float(rel_err) < 3e-2, f"bf16 relative error too large: {float(rel_err)}"

    print("KERNEL_OK")
</pallas_src>

<mosaic_0001>
module attributes {stable_mosaic.version = 11 : i64} {
  func.func @group_mlp_kernel(%arg0: i32, %arg1: i32, %arg2: memref<1x2x128xf32, #tpu.memory_space<vmem>>, %arg3: memref<1x128x512xf32, #tpu.memory_space<vmem>>, %arg4: memref<1x512x512xf32, #tpu.memory_space<vmem>>, %arg5: memref<1x2x512xf32, #tpu.memory_space<vmem>>) attributes {dimension_semantics = [#tpu.dimension_semantics<parallel>, #tpu.dimension_semantics<arbitrary>], iteration_bounds = array<i64: 1, 1>, scalar_prefetch = 0 : i64, scratch_operands = 0 : i64, tpu.core_type = #tpu.core_type<tc>, window_params = [{transform_indices = @transform_0, window_bounds = array<i64: 1, 2, 128>}, {transform_indices = @transform_1, window_bounds = array<i64: 1, 128, 512>}, {transform_indices = @transform_2, window_bounds = array<i64: 1, 512, 512>}, {transform_indices = @transform_3, window_bounds = array<i64: 1, 2, 512>}]} {
    %c0_i32 = arith.constant 0 : i32
    %0 = arith.cmpi eq, %arg1, %c0_i32 : i32
    %1 = arith.extui %0 : i1 to i32
    %c0_i32_0 = arith.constant 0 : i32
    %2 = arith.cmpi ne, %1, %c0_i32_0 : i32
    scf.if %2 {
      %cst_17 = arith.constant 0.000000e+00 : f32
      %19 = vector.broadcast %cst_17 : f32 to vector<2x512xf32>
      %c0_18 = arith.constant 0 : index
      %c0_19 = arith.constant 0 : index
      %c0_20 = arith.constant 0 : index
      %20 = vector.load %arg5[%c0_18, %c0_19, %c0_20] : memref<1x2x512xf32, #tpu.memory_space<vmem>>, vector<1x2x512xf32>
      %21 = vector.shape_cast %20 : vector<1x2x512xf32> to vector<2x512xf32>
      %22 = vector.shape_cast %19 : vector<2x512xf32> to vector<1x2x512xf32>
      tpu.vector_store %arg5[%c0_18, %c0_19, %c0_20], %22 {strides = array<i32>} : memref<1x2x512xf32, #tpu.memory_space<vmem>>, vector<1x2x512xf32>,
    } else {
    }
    %c0 = arith.constant 0 : index
    %c0_1 = arith.constant 0 : index
    %c0_2 = arith.constant 0 : index
    %3 = vector.load %arg2[%c0, %c0_1, %c0_2] : memref<1x2x128xf32, #tpu.memory_space<vmem>>, vector<1x2x128xf32>
    %4 = vector.shape_cast %3 : vector<1x2x128xf32> to vector<2x128xf32>
    %c0_3 = arith.constant 0 : index
    %c0_4 = arith.constant 0 : index
    %c0_5 = arith.constant 0 : index
    %5 = vector.load %arg3[%c0_3, %c0_4, %c0_5] : memref<1x128x512xf32, #tpu.memory_space<vmem>>, vector<1x128x512xf32>
    %6 = vector.shape_cast %5 : vector<1x128x512xf32> to vector<128x512xf32>
    %cst = arith.constant dense<0.000000e+00> : vector<2x512xf32>
    %7 = tpu.matmul %4, %6, %cst {dimension_numbers = #tpu.dot_dimension_numbers<[1], [0], [0], [1], [0, 0, 1, 1], [], []>} : vector<2x128xf32>, vector<128x512xf32>, vector<2x512xf32> -> vector<2x512xf32>
    %cst_6 = arith.constant 0.000000e+00 : f32
    %8 = vector.broadcast %cst_6 : f32 to vector<2x512xf32>
    %9 = arith.maximumf %7, %8 : vector<2x512xf32>
    %c0_7 = arith.constant 0 : index
    %c0_8 = arith.constant 0 : index
    %c0_9 = arith.constant 0 : index
    %10 = vector.load %arg5[%c0_7, %c0_8, %c0_9] : memref<1x2x512xf32, #tpu.memory_space<vmem>>, vector<1x2x512xf32>
    %11 = vector.shape_cast %10 : vector<1x2x512xf32> to vector<2x512xf32>
    %c0_10 = arith.constant 0 : index
    %c0_11 = arith.constant 0 : index
    %c0_12 = arith.constant 0 : index
    %12 = vector.load %arg4[%c0_10, %c0_11, %c0_12] : memref<1x512x512xf32, #tpu.memory_space<vmem>>, vector<1x512x512xf32>
    %13 = vector.shape_cast %12 : vector<1x512x512xf32> to vector<512x512xf32>
    %cst_13 = arith.constant dense<0.000000e+00> : vector<2x512xf32>
    %14 = tpu.matmul %9, %13, %cst_13 {dimension_numbers = #tpu.dot_dimension_numbers<[1], [0], [0], [1], [0, 0, 1, 1], [], []>} : vector<2x512xf32>, vector<512x512xf32>, vector<2x512xf32> -> vector<2x512xf32>
    %15 = arith.addf %11, %14 : vector<2x512xf32>
    %c0_14 = arith.constant 0 : index
    %c0_15 = arith.constant 0 : index
    %c0_16 = arith.constant 0 : index
    %16 = vector.load %arg5[%c0_14, %c0_15, %c0_16] : memref<1x2x512xf32, #tpu.memory_space<vmem>>, vector<1x2x512xf32>
    %17 = vector.shape_cast %16 : vector<1x2x512xf32> to vector<2x512xf32>
    %18 = vector.shape_cast %15 : vector<2x512xf32> to vector<1x2x512xf32>
    tpu.vector_store %arg5[%c0_14, %c0_15, %c0_16], %18 {strides = array<i32>} : memref<1x2x512xf32, #tpu.memory_space<vmem>>, vector<1x2x512xf32>,
    return
  }
  func.func @transform_0(%arg0: i32, %arg1: i32) -> (i32, i32, i32) {
    %c0_i32 = arith.constant 0 : i32
    %c0_i32_0 = arith.constant 0 : i32
    %c0_i32_1 = arith.constant 0 : i32
    return %arg0, %c0_i32, %c0_i32_0 : i32, i32, i32
  }
  func.func @transform_1(%arg0: i32, %arg1: i32) -> (i32, i32, i32) {
    %c0_i32 = arith.constant 0 : i32
    %c0_i32_0 = arith.constant 0 : i32
    return %arg0, %c0_i32, %arg1 : i32, i32, i32
  }
  func.func @transform_2(%arg0: i32, %arg1: i32) -> (i32, i32, i32) {
    %c0_i32 = arith.constant 0 : i32
    %c0_i32_0 = arith.constant 0 : i32
    return %arg0, %arg1, %c0_i32 : i32, i32, i32
  }
  func.func @transform_3(%arg0: i32, %arg1: i32) -> (i32, i32, i32) {
    %c0_i32 = arith.constant 0 : i32
    %c0_i32_0 = arith.constant 0 : i32
    %c0_i32_1 = arith.constant 0 : i32
    return %arg0, %c0_i32, %c0_i32_0 : i32, i32, i32
  }
}

</mosaic_0001>

<llo_original>
// kernel: tpu_custom_call.1
$region0: #{tpu_custom_call.1}
  #allocation0 [shape = 'u32[]', space=smem, size = 0x4, offset = 0x4, fixed_abs, tag = 'smem constant byte address 0x4 - core index']
  #allocation1 [shape = 'u32[144,128]{1,0:T(1,128)}', space=vmem, size = 0x12000, scoped, tag = 'internal scratch']
  %s0 = inlined_call_operand.hbm [shape: f32[1,2,128], index: 0, kind: input, shape index: {}]
  %s1 = inlined_call_operand.hbm [shape: f32[1,128,512], index: 1, kind: input, shape index: {}]
  %s2 = inlined_call_operand.hbm [shape: f32[1,512,512], index: 2, kind: input, shape index: {}]
  %s3 = inlined_call_operand.hbm [shape: f32[1,2,512], index: 3, kind: output, shape index: {}]
  %s4 = sld [smem:[#allocation0]]
  $region38: #{tpu_custom_call.1} parent=0
    _
  %s6 = ssub.s32 1, %s4
  %s7 = scalar_select 0, %s6, %s4
  $region1: #{tpu_custom_call.1} parent=0
    #allocation2 [shape = 'u8[1024]{0}', space=vmem, size = 0x400, scoped, tag = 'input window, operand 0, single buffered']
    #allocation3 [shape = 's32[1]{0}', space=sflag, size = 0x4, scoped, tag = 'scoped memory for tpu_custom_call.1']
    #allocation4 [shape = 's32[1]{0}', space=sflag, size = 0x4, scoped, tag = 'scoped memory for tpu_custom_call.1']
    #allocation5 [shape = 'u8[262144]{0}', space=vmem, size = 0x40000, scoped, tag = 'input window, operand 1, single buffered']
    #allocation6 [shape = 's32[1]{0}', space=sflag, size = 0x4, scoped, tag = 'scoped memory for tpu_custom_call.1']
    #allocation7 [shape = 'u8[1048576]{0}', space=vmem, size = 0x100000, scoped, tag = 'input window, operand 2, single buffered']
    #allocation8 [shape = 'u8[4096]{0}', space=vmem, size = 0x1000, scoped, tag = 'output window, operand 0, single buffered']
    %8 = vsyncpa [#allocation3], 0
    %9 = vsyncpa [#allocation6], 0
    %10 = vsyncpa [#allocation4], 0
    // Predicated region
    $region2: #{tpu_custom_call.1} parent=1 // pred_check
      _
    $region3: #{tpu_custom_call.1} parent=1 // pred_check_branch
      %12 = sbr.rel (0) target = $region5
    $region4: #{tpu_custom_call.1} parent=1 // pred_region
      %s14 = ssub.s32 32, 32
      %15 = vsyncadd [#allocation3], %s14
      %s17 = sshll.u32 [#allocation2], 4
      %s18 = int_to_ptr.vmem [resolvable:$true] %s17
      %20 = dma.hbm_to_vmem [thread:$0]  %s0, 32, %s18, [#allocation3]
    $region5: #{tpu_custom_call.1} parent=1 // pred_fallthru
      _
    // Predicated region
    $region6: #{tpu_custom_call.1} parent=1 // pred_check
      _
    $region7: #{tpu_custom_call.1} parent=1 // pred_check_branch
      %22 = sbr.rel (0) target = $region9
    $region8: #{tpu_custom_call.1} parent=1 // pred_region
      %s24 = ssub.s32 8192, 8192
      %25 = vsyncadd [#allocation6], %s24
      %s26 = sshll.u32 [#allocation5], 4
      %s27 = int_to_ptr.vmem [resolvable:$true] %s26
      %32 = dma.hbm_to_vmem [thread:$0]  %s1, 8192, %s27, [#allocation6], 512, 512, 32
    $region9: #{tpu_custom_call.1} parent=1 // pred_fallthru
      _
    // Predicated region
    $region10: #{tpu_custom_call.1} parent=1 // pred_check
      _
    $region11: #{tpu_custom_call.1} parent=1 // pred_check_branch
      %34 = sbr.rel (0) target = $region13
    $region12: #{tpu_custom_call.1} parent=1 // pred_region
      %s36 = ssub.s32 32768, 32768
      %37 = vsyncadd [#allocation6], %s36
      %s38 = sshll.u32 [#allocation7], 4
      %s39 = int_to_ptr.vmem [resolvable:$true] %s38
      %44 = dma.hbm_to_vmem [thread:$0]  %s2, 32768, %s39, [#allocation6], 512, 512, 32
    $region13: #{tpu_custom_call.1} parent=1 // pred_fallthru
      _
    // Predicated region
    $region14: #{tpu_custom_call.1} parent=1 // pred_check
      _
    $region15: #{tpu_custom_call.1} parent=1 // pred_check_branch
      %46 = sbr.rel (0) target = $region17
    $region16: #{tpu_custom_call.1} parent=1 // pred_region
      %47 = dma.done [#allocation3], 32
    $region17: #{tpu_custom_call.1} parent=1 // pred_fallthru
      _
    // Predicated region
    $region18: #{tpu_custom_call.1} parent=1 // pred_check
      _
    $region19: #{tpu_custom_call.1} parent=1 // pred_check_branch
      %49 = sbr.rel (0) target = $region21
    $region20: #{tpu_custom_call.1} parent=1 // pred_region
      %50 = dma.done [#allocation6], 8192
    $region21: #{tpu_custom_call.1} parent=1 // pred_fallthru
      _
    // Predicated region
    $region22: #{tpu_custom_call.1} parent=1 // pred_check
      _
    $region23: #{tpu_custom_call.1} parent=1 // pred_check_branch
      %52 = sbr.rel (0) target = $region25
    $region24: #{tpu_custom_call.1} parent=1 // pred_region
      %53 = dma.done [#allocation6], 32768
    $region25: #{tpu_custom_call.1} parent=1 // pred_fallthru
      _
    %p54 = scmp.eq.s32.totalorder 0, 0
    // Predicated region
    $region26: #{tpu_custom_call.1} parent=1 // pred_check
      %p55 = pneg %p54
    $region27: #{tpu_custom_call.1} parent=1 // pred_check_branch
      %57 = sbr.rel (%p55) target = $region29
    $region28: #{tpu_custom_call.1} parent=1 // pred_region
      %58 = vst [vmem:[#allocation8] sm:$0xff] 0.0
    $region29: #{tpu_custom_call.1} parent=1 // pred_fallthru
      _
    %v59 = vld [vmem:[#allocation2] sm:$0x3]
    %v60 = vld [vmem:[#allocation5] sm:$0xff]
    %v61 = vld [vmem:[#allocation5 + $0x8] sm:$0xff]
    %v62 = vld [vmem:[#allocation5 + $0x10] sm:$0xff]
    %v63 = vld [vmem:[#allocation5 + $0x18] sm:$0xff]
    %v64 = vld [vmem:[#allocation5 + $0x20] sm:$0xff]
    %v65 = vld [vmem:[#allocation5 + $0x28] sm:$0xff]
    %v66 = vld [vmem:[#allocation5 + $0x30] sm:$0xff]
    %v67 = vld [vmem:[#allocation5 + $0x38] sm:$0xff]
    %v68 = vld [vmem:[#allocation5 + $0x40] sm:$0xff]
    %v69 = vld [vmem:[#allocation5 + $0x48] sm:$0xff]
    %v70 = vld [vmem:[#allocation5 + $0x50] sm:$0xff]
    %v71 = vld [vmem:[#allocation5 + $0x58] sm:$0xff]
    %v72 = vld [vmem:[#allocation5 + $0x60] sm:$0xff]
    %v73 = vld [vmem:[#allocation5 + $0x68] sm:$0xff]
    %v74 = vld [vmem:[#allocation5 + $0x70] sm:$0xff]
    %v75 = vld [vmem:[#allocation5 + $0x78] sm:$0xff]
    %v76 = vld [vmem:[#allocation5 + $0x80] sm:$0xff]
    %v77 = vld [vmem:[#allocation5 + $0x88] sm:$0xff]
    %v78 = vld [vmem:[#allocation5 + $0x90] sm:$0xff]
    %v79 = vld [vmem:[#allocation5 + $0x98] sm:$0xff]
    %v80 = vld [vmem:[#allocation5 + $0xa0] sm:$0xff]
    %v81 = vld [vmem:[#allocation5 + $0xa8] sm:$0xff]
    %v82 = vld [vmem:[#allocation5 + $0xb0] sm:$0xff]
    %v83 = vld [vmem:[#allocation5 + $0xb8] sm:$0xff]
    %v84 = vld [vmem:[#allocation5 + $0xc0] sm:$0xff]
    %v85 = vld [vmem:[#allocation5 + $0xc8] sm:$0xff]
    %v86 = vld [vmem:[#allocation5 + $0xd0] sm:$0xff]
    %v87 = vld [vmem:[#allocation5 + $0xd8] sm:$0xff]
    %v88 = vld [vmem:[#allocation5 + $0xe0] sm:$0xff]
    %v89 = vld [vmem:[#allocation5 + $0xe8] sm:$0xff]
    %v90 = vld [vmem:[#allocation5 + $0xf0] sm:$0xff]
    %v91 = vld [vmem:[#allocation5 + $0xf8] sm:$0xff]
    %v92 = vld [vmem:[#allocation5 + $0x100] sm:$0xff]
    %v93 = vld [vmem:[#allocation5 + $0x108] sm:$0xff]
    %v94 = vld [vmem:[#allocation5 + $0x110] sm:$0xff]
    %v95 = vld [vmem:[#allocation5 + $0x118] sm:$0xff]
    %v96 = vld [vmem:[#allocation5 + $0x120] sm:$0xff]
    %v97 = vld [vmem:[#allocation5 + $0x128] sm:$0xff]
    %v98 = vld [vmem:[#allocation5 + $0x130] sm:$0xff]
    %v99 = vld [vmem:[#allocation5 + $0x138] sm:$0xff]
    %v100 = vld [vmem:[#allocation5 + $0x140] sm:$0xff]
    %v101 = vld [vmem:[#allocation5 + $0x148] sm:$0xff]
    %v102 = vld [vmem:[#allocation5 + $0x150] sm:$0xff]
    %v103 = vld [vmem:[#allocation5 + $0x158] sm:$0xff]
    %v104 = vld [vmem:[#allocation5 + $0x160] sm:$0xff]
    %v105 = vld [vmem:[#allocation5 + $0x168] sm:$0xff]
    %v106 = vld [vmem:[#allocation5 + $0x170] sm:$0xff]
    %v107 = vld [vmem:[#allocation5 + $0x178] sm:$0xff]
    %v108 = vld [vmem:[#allocation5 + $0x180] sm:$0xff]
    %v109 = vld [vmem:[#allocation5 + $0x188] sm:$0xff]
    %v110 = vld [vmem:[#allocation5 + $0x190] sm:$0xff]
    %v111 = vld [vmem:[#allocation5 + $0x198] sm:$0xff]
    %v112 = vld [vmem:[#allocation5 + $0x1a0] sm:$0xff]
    %v113 = vld [vmem:[#allocation5 + $0x1a8] sm:$0xff]
    %v114 = vld [vmem:[#allocation5 + $0x1b0] sm:$0xff]
    %v115 = vld [vmem:[#allocation5 + $0x1b8] sm:$0xff]
    %v116 = vld [vmem:[#allocation5 + $0x1c0] sm:$0xff]
    %v117 = vld [vmem:[#allocation5 + $0x1c8] sm:$0xff]
    %v118 = vld [vmem:[#allocation5 + $0x1d0] sm:$0xff]
    %v119 = vld [vmem:[#allocation5 + $0x1d8] sm:$0xff]
    %v120 = vld [vmem:[#allocation5 + $0x1e0] sm:$0xff]
    %v121 = vld [vmem:[#allocation5 + $0x1e8] sm:$0xff]
    %v122 = vld [vmem:[#allocation5 + $0x1f0] sm:$0xff]
    %v123 = vld [vmem:[#allocation5 + $0x1f8] sm:$0xff]
    %124 = vmatprep.subr.mxu0 %v121
    %125 = vmatpush1.msra.mxu0 %v120
    %126 = vmatprep.subr.mxu0 %v117
    %127 = vmatpush1.msra.mxu0 %v116
    %128 = vmatprep.subr.mxu0 %v113
    %129 = vmatpush1.msra.mxu0 %v112
    %130 = vmatprep.subr.mxu0 %v109
    %131 = vmatpush1.msra.mxu0 %v108
    %132 = vmatprep.subr.mxu0 %v105
    %133 = vmatpush1.msra.mxu0 %v104
    %134 = vmatprep.subr.mxu0 %v101
    %135 = vmatpush1.msra.mxu0 %v100
    %136 = vmatprep.subr.mxu0 %v97
    %137 = vmatpush1.msra.mxu0 %v96
    %138 = vmatprep.subr.mxu0 %v93
    %139 = vmatpush1.msra.mxu0 %v92
    %140 = vmatprep.subr.mxu0 %v89
    %141 = vmatpush1.msra.mxu0 %v88
    %142 = vmatprep.subr.mxu0 %v85
    %143 = vmatpush1.msra.mxu0 %v84
    %144 = vmatprep.subr.mxu0 %v81
    %145 = vmatpush1.msra.mxu0 %v80
    %146 = vmatprep.subr.mxu0 %v77
    %147 = vmatpush1.msra.mxu0 %v76
    %148 = vmatprep.subr.mxu0 %v73
    %149 = vmatpush1.msra.mxu0 %v72
    %150 = vmatprep.subr.mxu0 %v69
    %151 = vmatpush1.msra.mxu0 %v68
    %152 = vmatprep.subr.mxu0 %v65
    %153 = vmatpush1.msra.mxu0 %v64
    %154 = vmatprep.subr.mxu0 %v61
    %155 = vmatpush1.msra.mxu0 %v60
    %156 = vmatprep.subr.mxu0 0.0
    %157 = vmatpush2.msra.mxu0 0.0
    %158 = vmatprep.subr.mxu0 0.0
    %159 = vmatpush2.msra.mxu0 0.0
    %160 = vmatprep.subr.mxu0 0.0
    %161 = vmatpush2.msra.mxu0 0.0
    %162 = vmatprep.subr.mxu0 0.0
    %163 = vmatpush2.msra.mxu0 0.0
    %164 = vmatprep.subr.mxu0 0.0
    %165 = vmatpush2.msra.mxu0 0.0
    %166 = vmatprep.subr.mxu0 0.0
    %167 = vmatpush2.msra.mxu0 0.0
    %168 = vmatprep.subr.mxu0 0.0
    %169 = vmatpush2.msra.mxu0 0.0
    %170 = vmatprep.subr.mxu0 0.0
    %171 = vmatpush2.msra.mxu0 0.0
    %172 = vmatprep.subr.mxu0 0.0
    %173 = vmatpush2.msra.mxu0 0.0
    %174 = vmatprep.subr.mxu0 0.0
    %175 = vmatpush2.msra.mxu0 0.0
    %176 = vmatprep.subr.mxu0 0.0
    %177 = vmatpush2.msra.mxu0 0.0
    %178 = vmatprep.subr.mxu0 0.0
    %179 = vmatpush2.msra.mxu0 0.0
    %180 = vmatprep.subr.mxu0 0.0
    %181 = vmatpush2.msra.mxu0 0.0
    %182 = vmatprep.subr.mxu0 0.0
    %183 = vmatpush2.msra.mxu0 0.0
    %184 = vmatprep.subr.mxu0 0.0
    %185 = vmatpush2.msra.mxu0 0.0
    %186 = vmatprep.subr.mxu0 0.0
    %187 = vmatpush2.msra.mxu0 0.0
    %188 = vmatprep.mubr.f32.mxu0 0.0
    %189 = vmatmul.mubr.f32.gmra.mxu0 %v59
    %v190 = vpop.f32.mrf.mxu0
    %v191 = vadd.f32 0.0, %v190
    %v192 = vpop.f32.mrf.mxu0
    %v193 = vadd.f32 0.0, %v192
    %194 = vdwg.mxu0
    %195 = vmatprep.subr.mxu0 %v123
    %196 = vmatpush1.msra.mxu0 %v122
    %197 = vmatprep.subr.mxu0 %v119
    %198 = vmatpush1.msra.mxu0 %v118
    %199 = vmatprep.subr.mxu0 %v115
    %200 = vmatpush1.msra.mxu0 %v114
    %201 = vmatprep.subr.mxu0 %v111
    %202 = vmatpush1.msra.mxu0 %v110
    %203 = vmatprep.subr.mxu0 %v107
    %204 = vmatpush1.msra.mxu0 %v106
    %205 = vmatprep.subr.mxu0 %v103
    %206 = vmatpush1.msra.mxu0 %v102
    %207 = vmatprep.subr.mxu0 %v99
    %208 = vmatpush1.msra.mxu0 %v98
    %209 = vmatprep.subr.mxu0 %v95
    %210 = vmatpush1.msra.mxu0 %v94
    %211 = vmatprep.subr.mxu0 %v91
    %212 = vmatpush1.msra.mxu0 %v90
    %213 = vmatprep.subr.mxu0 %v87
    %214 = vmatpush1.msra.mxu0 %v86
    %215 = vmatprep.subr.mxu0 %v83
    %216 = vmatpush1.msra.mxu0 %v82
    %217 = vmatprep.subr.mxu0 %v79
    %218 = vmatpush1.msra.mxu0 %v78
    %219 = vmatprep.subr.mxu0 %v75
    %220 = vmatpush1.msra.mxu0 %v74
    %221 = vmatprep.subr.mxu0 %v71
    %222 = vmatpush1.msra.mxu0 %v70
    %223 = vmatprep.subr.mxu0 %v67
    %224 = vmatpush1.msra.mxu0 %v66
    %225 = vmatprep.subr.mxu0 %v63
    %226 = vmatpush1.msra.mxu0 %v62
    %227 = vmatprep.subr.mxu0 0.0
    %228 = vmatpush2.msra.mxu0 0.0
    %229 = vmatprep.subr.mxu0 0.0
    %230 = vmatpush2.msra.mxu0 0.0
    %231 = vmatprep.subr.mxu0 0.0
    %232 = vmatpush2.msra.mxu0 0.0
    %233 = vmatprep.subr.mxu0 0.0
    %234 = vmatpush2.msra.mxu0 0.0
    %235 = vmatprep.subr.mxu0 0.0
    %236 = vmatpush2.msra.mxu0 0.0
    %237 = vmatprep.subr.mxu0 0.0
    %238 = vmatpush2.msra.mxu0 0.0
    %239 = vmatprep.subr.mxu0 0.0
    %240 = vmatpush2.msra.mxu0 0.0
    %241 = vmatprep.subr.mxu0 0.0
    %242 = vmatpush2.msra.mxu0 0.0
    %243 = vmatprep.subr.mxu0 0.0
    %244 = vmatpush2.msra.mxu0 0.0
    %245 = vmatprep.subr.mxu0 0.0
    %246 = vmatpush2.msra.mxu0 0.0
    %247 = vmatprep.subr.mxu0 0.0
    %248 = vmatpush2.msra.mxu0 0.0
    %249 = vmatprep.subr.mxu0 0.0
    %250 = vmatpush2.msra.mxu0 0.0
    %251 = vmatprep.subr.mxu0 0.0
    %252 = vmatpush2.msra.mxu0 0.0
    %253 = vmatprep.subr.mxu0 0.0
    %254 = vmatpush2.msra.mxu0 0.0
    %255 = vmatprep.subr.mxu0 0.0
    %256 = vmatpush2.msra.mxu0 0.0
    %257 = vmatprep.subr.mxu0 0.0
    %258 = vmatpush2.msra.mxu0 0.0
    %259 = vmatprep.mubr.f32.mxu0 0.0
    %260 = vmatmul.mubr.f32.gmra.mxu0 %v59
    %v261 = vpop.f32.mrf.mxu0
    %v262 = vadd.f32 0.0, %v261
    %v263 = vpop.f32.mrf.mxu0
    %v264 = vadd.f32 0.0, %v263
    %265 = vdwg.mxu0
    %v266 = vmax.f32 %v191, 0.0
    %v267 = vmax.f32 %v193, 0.0
    %v268 = vmax.f32 %v262, 0.0
    %v269 = vmax.f32 %v264, 0.0
    %v270 = vld [vmem:[#allocation8] sm:$0xff]
    %v271 = vld [vmem:[#allocation7] sm:$0xff]
    %v272 = vld [vmem:[#allocation7 + $0x8] sm:$0xff]
    %v273 = vld [vmem:[#allocation7 + $0x10] sm:$0xff]
    %v274 = vld [vmem:[#allocation7 + $0x18] sm:$0xff]
    %v275 = vld [vmem:[#allocation7 + $0x20] sm:$0xff]
    %v276 = vld [vmem:[#allocation7 + $0x28] sm:$0xff]
    %v277 = vld [vmem:[#allocation7 + $0x30] sm:$0xff]
    %v278 = vld [vmem:[#allocation7 + $0x38] sm:$0xff]
    %v279 = vld [vmem:[#allocation7 + $0x40] sm:$0xff]
    %v280 = vld [vmem:[#allocation7 + $0x48] sm:$0xff]
    %v281 = vld [vmem:[#allocation7 + $0x50] sm:$0xff]
    %v282 = vld [vmem:[#allocation7 + $0x58] sm:$0xff]
    %v283 = vld [vmem:[#allocation7 + $0x60] sm:$0xff]
    %v284 = vld [vmem:[#allocation7 + $0x68] sm:$0xff]
    %v285 = vld [vmem:[#allocation7 + $0x70] sm:$0xff]
    %v286 = vld [vmem:[#allocation7 + $0x78] sm:$0xff]
    %v287 = vld [vmem:[#allocation7 + $0x80] sm:$0xff]
    %v288 = vld [vmem:[#allocation7 + $0x88] sm:$0xff]
    %v289 = vld [vmem:[#allocation7 + $0x90] sm:$0xff]
    %v290 = vld [vmem:[#allocation7 + $0x98] sm:$0xff]
    %v291 = vld [vmem:[#allocation7 + $0xa0] sm:$0xff]
    %v292 = vld [vmem:[#allocation7 + $0xa8] sm:$0xff]
    %v293 = vld [vmem:[#allocation7 + $0xb0] sm:$0xff]
    %v294 = vld [vmem:[#allocation7 + $0xb8] sm:$0xff]
    %v295 = vld [vmem:[#allocation7 + $0xc0] sm:$0xff]
    %v296 = vld [vmem:[#allocation7 + $0xc8] sm:$0xff]
    %v297 = vld [vmem:[#allocation7 + $0xd0] sm:$0xff]
    %v298 = vld [vmem:[#allocation7 + $0xd8] sm:$0xff]
    %v299 = vld [vmem:[#allocation7 + $0xe0] sm:$0xff]
    %v300 = vld [vmem:[#allocation7 + $0xe8] sm:$0xff]
    %v301 = vld [vmem:[#allocation7 + $0xf0] sm:$0xff]
    %v302 = vld [vmem:[#allocation7 + $0xf8] sm:$0xff]
    %v303 = vld [vmem:[#allocation7 + $0x100] sm:$0xff]
    %v304 = vld [vmem:[#allocation7 + $0x108] sm:$0xff]
    %v305 = vld [vmem:[#allocation7 + $0x110] sm:$0xff]
    %v306 = vld [vmem:[#allocation7 + $0x118] sm:$0xff]
    %v307 = vld [vmem:[#allocation7 + $0x120] sm:$0xff]
    %v308 = vld [vmem:[#allocation7 + $0x128] sm:$0xff]
    %v309 = vld [vmem:[#allocation7 + $0x130] sm:$0xff]
    %v310 = vld [vmem:[#allocation7 + $0x138] sm:$0xff]
    %v311 = vld [vmem:[#allocation7 + $0x140] sm:$0xff]
    %v312 = vld [vmem:[#allocation7 + $0x148] sm:$0xff]
    %v313 = vld [vmem:[#allocation7 + $0x150] sm:$0xff]
    %v314 = vld [vmem:[#allocation7 + $0x158] sm:$0xff]
    %v315 = vld [vmem:[#allocation7 + $0x160] sm:$0xff]
    %v316 = vld [vmem:[#allocation7 + $0x168] sm:$0xff]
    %v317 = vld [vmem:[#allocation7 + $0x170] sm:$0xff]
    %v318 = vld [vmem:[#allocation7 + $0x178] sm:$0xff]
    %v319 = vld [vmem:[#allocation7 + $0x180] sm:$0xff]
    %v320 = vld [vmem:[#allocation7 + $0x188] sm:$0xff]
    %v321 = vld [vmem:[#allocation7 + $0x190] sm:$0xff]
    %v322 = vld [vmem:[#allocation7 + $0x198] sm:$0xff]
    %v323 = vld [vmem:[#allocation7 + $0x1a0] sm:$0xff]
    %v324 = vld [vmem:[#allocation7 + $0x1a8] sm:$0xff]
    %v325 = vld [vmem:[#allocation7 + $0x1b0] sm:$0xff]
    %v326 = vld [vmem:[#allocation7 + $0x1b8] sm:$0xff]
    %v327 = vld [vmem:[#allocation7 + $0x1c0] sm:$0xff]
    %v328 = vld [vmem:[#allocation7 + $0x1c8] sm:$0xff]
    %v329 = vld [vmem:[#allocation7 + $0x1d0] sm:$0xff]
    %v330 = vld [vmem:[#allocation7 + $0x1d8] sm:$0xff]
    %v331 = vld [vmem:[#allocation7 + $0x1e0] sm:$0xff]
    %v332 = vld [vmem:[#allocation7 + $0x1e8] sm:$0xff]
    %v333 = vld [vmem:[#allocation7 + $0x1f0] sm:$0xff]
    %v334 = vld [vmem:[#allocation7 + $0x1f8] sm:$0xff]
    %v335 = vld [vmem:[#allocation7 + $0x200] sm:$0xff]
    %v336 = vld [vmem:[#allocation7 + $0x208] sm:$0xff]
    %v337 = vld [vmem:[#allocation7 + $0x210] sm:$0xff]
    %v338 = vld [vmem:[#allocation7 + $0x218] sm:$0xff]
    %v339 = vld [vmem:[#allocation7 + $0x220] sm:$0xff]
    %v340 = vld [vmem:[#allocation7 + $0x228] sm:$0xff]
    %v341 = vld [vmem:[#allocation7 + $0x230] sm:$0xff]
    %v342 = vld [vmem:[#allocation7 + $0x238] sm:$0xff]
    %v343 = vld [vmem:[#allocation7 + $0x240] sm:$0xff]
    %v344 = vld [vmem:[#allocation7 + $0x248] sm:$0xff]
    %v345 = vld [vmem:[#allocation7 + $0x250] sm:$0xff]
    %v346 = vld [vmem:[#allocation7 + $0x258] sm:$0xff]
    %v347 = vld [vmem:[#allocation7 + $0x260] sm:$0xff]
    %v348 = vld [vmem:[#allocation7 + $0x268] sm:$0xff]
    %v349 = vld [vmem:[#allocation7 + $0x270] sm:$0xff]
    %v350 = vld [vmem:[#allocation7 + $0x278] sm:$0xff]
    %v351 = vld [vmem:[#allocation7 + $0x280] sm:$0xff]
    %v352 = vld [vmem:[#allocation7 + $0x288] sm:$0xff]
    %v353 = vld [vmem:[#allocation7 + $0x290] sm:$0xff]
    %v354 = vld [vmem:[#allocation7 + $0x298] sm:$0xff]
    %v355 = vld [vmem:[#allocation7 + $0x2a0] sm:$0xff]
    %v356 = vld [vmem:[#allocation7 + $0x2a8] sm:$0xff]
    %v357 = vld [vmem:[#allocation7 + $0x2b0] sm:$0xff]
    %v358 = vld [vmem:[#allocation7 + $0x2b8] sm:$0xff]
    %v359 = vld [vmem:[#allocation7 + $0x2c0] sm:$0xff]
    %v360 = vld [vmem:[#allocation7 + $0x2c8] sm:$0xff]
    %v361 = vld [vmem:[#allocation7 + $0x2d0] sm:$0xff]
    %v362 = vld [vmem:[#allocation7 + $0x2d8] sm:$0xff]
    %v363 = vld [vmem:[#allocation7 + $0x2e0] sm:$0xff]
    %v364 = vld [vmem:[#allocation7 + $0x2e8] sm:$0xff]
    %v365 = vld [vmem:[#allocation7 + $0x2f0] sm:$0xff]
    %v366 = vld [vmem:[#allocation7 + $0x2f8] sm:$0xff]
    %v367 = vld [vmem:[#allocation7 + $0x300] sm:$0xff]
    %v368 = vld [vmem:[#allocation7 + $0x308] sm:$0xff]
    %v369 = vld [vmem:[#allocation7 + $0x310] sm:$0xff]
    %v370 = vld [vmem:[#allocation7 + $0x318] sm:$0xff]
    %v371 = vld [vmem:[#allocation7 + $0x320] sm:$0xff]
    %v372 = vld [vmem:[#allocation7 + $0x328] sm:$0xff]
    %v373 = vld [vmem:[#allocation7 + $0x330] sm:$0xff]
    %v374 = vld [vmem:[#allocation7 + $0x338] sm:$0xff]
    %v375 = vld [vmem:[#allocation7 + $0x340] sm:$0xff]
    %v376 = vld [vmem:[#allocation7 + $0x348] sm:$0xff]
    %v377 = vld [vmem:[#allocation7 + $0x350] sm:$0xff]
    %v378 = vld [vmem:[#allocation7 + $0x358] sm:$0xff]
    %v379 = vld [vmem:[#allocation7 + $0x360] sm:$0xff]
    %v380 = vld [vmem:[#allocation7 + $0x368] sm:$0xff]
    %v381 = vld [vmem:[#allocation7 + $0x370] sm:$0xff]
    %v382 = vld [vmem:[#allocation7 + $0x378] sm:$0xff]
    %v383 = vld [vmem:[#allocation7 + $0x380] sm:$0xff]
    %v384 = vld [vmem:[#allocation7 + $0x388] sm:$0xff]
    %v385 = vld [vmem:[#allocation7 + $0x390] sm:$0xff]
    %v386 = vld [vmem:[#allocation7 + $0x398] sm:$0xff]
    %v387 = vld [vmem:[#allocation7 + $0x3a0] sm:$0xff]
    %v388 = vld [vmem:[#allocation7 + $0x3a8] sm:$0xff]
    %v389 = vld [vmem:[#allocation7 + $0x3b0] sm:$0xff]
    %v390 = vld [vmem:[#allocation7 + $0x3b8] sm:$0xff]
    %v391 = vld [vmem:[#allocation7 + $0x3c0] sm:$0xff]
    %v392 = vld [vmem:[#allocation7 + $0x3c8] sm:$0xff]
    %v393 = vld [vmem:[#allocation7 + $0x3d0] sm:$0xff]
    %v394 = vld [vmem:[#allocation7 + $0x3d8] sm:$0xff]
    %v395 = vld [vmem:[#allocation7 + $0x3e0] sm:$0xff]
    %v396 = vld [vmem:[#allocation7 + $0x3e8] sm:$0xff]
    %v397 = vld [vmem:[#allocation7 + $0x3f0] sm:$0xff]
    %v398 = vld [vmem:[#allocation7 + $0x3f8] sm:$0xff]
    %v399 = vld [vmem:[#allocation7 + $0x400] sm:$0xff]
    %v400 = vld [vmem:[#allocation7 + $0x408] sm:$0xff]
    %v401 = vld [vmem:[#allocation7 + $0x410] sm:$0xff]
    %v402 = vld [vmem:[#allocation7 + $0x418] sm:$0xff]
    %v403 = vld [vmem:[#allocation7 + $0x420] sm:$0xff]
    %v404 = vld [vmem:[#allocation7 + $0x428] sm:$0xff]
    %v405 = vld [vmem:[#allocation7 + $0x430] sm:$0xff]
    %v406 = vld [vmem:[#allocation7 + $0x438] sm:$0xff]
    %v407 = vld [vmem:[#allocation7 + $0x440] sm:$0xff]
    %v408 = vld [vmem:[#allocation7 + $0x448] sm:$0xff]
    %v409 = vld [vmem:[#allocation7 + $0x450] sm:$0xff]
    %v410 = vld [vmem:[#allocation7 + $0x458] sm:$0xff]
    %v411 = vld [vmem:[#allocation7 + $0x460] sm:$0xff]
    %v412 = vld [vmem:[#allocation7 + $0x468] sm:$0xff]
    %v413 = vld [vmem:[#allocation7 + $0x470] sm:$0xff]
    %v414 = vld [vmem:[#allocation7 + $0x478] sm:$0xff]
    %v415 = vld [vmem:[#allocation7 + $0x480] sm:$0xff]
    %v416 = vld [vmem:[#allocation7 + $0x488] sm:$0xff]
    %v417 = vld [vmem:[#allocation7 + $0x490] sm:$0xff]
    %v418 = vld [vmem:[#allocation7 + $0x498] sm:$0xff]
    %v419 = vld [vmem:[#allocation7 + $0x4a0] sm:$0xff]
    %v420 = vld [vmem:[#allocation7 + $0x4a8] sm:$0xff]
    %v421 = vld [vmem:[#allocation7 + $0x4b0] sm:$0xff]
    %v422 = vld [vmem:[#allocation7 + $0x4b8] sm:$0xff]
    %v423 = vld [vmem:[#allocation7 + $0x4c0] sm:$0xff]
    %v424 = vld [vmem:[#allocation7 + $0x4c8] sm:$0xff]
    %v425 = vld [vmem:[#allocation7 + $0x4d0] sm:$0xff]
    %v426 = vld [vmem:[#allocation7 + $0x4d8] sm:$0xff]
    %v427 = vld [vmem:[#allocation7 + $0x4e0] sm:$0xff]
    %v428 = vld [vmem:[#allocation7 + $0x4e8] sm:$0xff]
    %v429 = vld [vmem:[#allocation7 + $0x4f0] sm:$0xff]
    %v430 = vld [vmem:[#allocation7 + $0x4f8] sm:$0xff]
    %v431 = vld [vmem:[#allocation7 + $0x500] sm:$0xff]
    %v432 = vld [vmem:[#allocation7 + $0x508] sm:$0xff]
    %v433 = vld [vmem:[#allocation7 + $0x510] sm:$0xff]
    %v434 = vld [vmem:[#allocation7 + $0x518] sm:$0xff]
    %v435 = vld [vmem:[#allocation7 + $0x520] sm:$0xff]
    %v436 = vld [vmem:[#allocation7 + $0x528] sm:$0xff]
    %v437 = vld [vmem:[#allocation7 + $0x530] sm:$0xff]
    %v438 = vld [vmem:[#allocation7 + $0x538] sm:$0xff]
    %v439 = vld [vmem:[#allocation7 + $0x540] sm:$0xff]
    %v440 = vld [vmem:[#allocation7 + $0x548] sm:$0xff]
    %v441 = vld [vmem:[#allocation7 + $0x550] sm:$0xff]
    %v442 = vld [vmem:[#allocation7 + $0x558] sm:$0xff]
    %v443 = vld [vmem:[#allocation7 + $0x560] sm:$0xff]
    %v444 = vld [vmem:[#allocation7 + $0x568] sm:$0xff]
    %v445 = vld [vmem:[#allocation7 + $0x570] sm:$0xff]
    %v446 = vld [vmem:[#allocation7 + $0x578] sm:$0xff]
    %v447 = vld [vmem:[#allocation7 + $0x580] sm:$0xff]
    %v448 = vld [vmem:[#allocation7 + $0x588] sm:$0xff]
    %v449 = vld [vmem:[#allocation7 + $0x590] sm:$0xff]
    %v450 = vld [vmem:[#allocation7 + $0x598] sm:$0xff]
    %v451 = vld [vmem:[#allocation7 + $0x5a0] sm:$0xff]
    %v452 = vld [vmem:[#allocation7 + $0x5a8] sm:$0xff]
    %v453 = vld [vmem:[#allocation7 + $0x5b0] sm:$0xff]
    %v454 = vld [vmem:[#allocation7 + $0x5b8] sm:$0xff]
    %v455 = vld [vmem:[#allocation7 + $0x5c0] sm:$0xff]
    %v456 = vld [vmem:[#allocation7 + $0x5c8] sm:$0xff]
    %v457 = vld [vmem:[#allocation7 + $0x5d0] sm:$0xff]
    %v458 = vld [vmem:[#allocation7 + $0x5d8] sm:$0xff]
    %v459 = vld [vmem:[#allocation7 + $0x5e0] sm:$0xff]
    %v460 = vld [vmem:[#allocation7 + $0x5e8] sm:$0xff]
    %v461 = vld [vmem:[#allocation7 + $0x5f0] sm:$0xff]
    %v462 = vld [vmem:[#allocation7 + $0x5f8] sm:$0xff]
    %v463 = vld [vmem:[#allocation7 + $0x600] sm:$0xff]
    %v464 = vld [vmem:[#allocation7 + $0x608] sm:$0xff]
    %v465 = vld [vmem:[#allocation7 + $0x610] sm:$0xff]
    %v466 = vld [vmem:[#allocation7 + $0x618] sm:$0xff]
    %v467 = vld [vmem:[#allocation7 + $0x620] sm:$0xff]
    %v468 = vld [vmem:[#allocation7 + $0x628] sm:$0xff]
    %v469 = vld [vmem:[#allocation7 + $0x630] sm:$0xff]
    %v470 = vld [vmem:[#allocation7 + $0x638] sm:$0xff]
    %v471 = vld [vmem:[#allocation7 + $0x640] sm:$0xff]
    %v472 = vld [vmem:[#allocation7 + $0x648] sm:$0xff]
    %v473 = vld [vmem:[#allocation7 + $0x650] sm:$0xff]
    %v474 = vld [vmem:[#allocation7 + $0x658] sm:$0xff]
    %v475 = vld [vmem:[#allocation7 + $0x660] sm:$0xff]
    %v476 = vld [vmem:[#allocation7 + $0x668] sm:$0xff]
    %v477 = vld [vmem:[#allocation7 + $0x670] sm:$0xff]
    %v478 = vld [vmem:[#allocation7 + $0x678] sm:$0xff]
    %v479 = vld [vmem:[#allocation7 + $0x680] sm:$0xff]
    %v480 = vld [vmem:[#allocation7 + $0x688] sm:$0xff]
    %v481 = vld [vmem:[#allocation7 + $0x690] sm:$0xff]
    %v482 = vld [vmem:[#allocation7 + $0x698] sm:$0xff]
    %v483 = vld [vmem:[#allocation7 + $0x6a0] sm:$0xff]
    %v484 = vld [vmem:[#allocation7 + $0x6a8] sm:$0xff]
    %v485 = vld [vmem:[#allocation7 + $0x6b0] sm:$0xff]
    %v486 = vld [vmem:[#allocation7 + $0x6b8] sm:$0xff]
    %v487 = vld [vmem:[#allocation7 + $0x6c0] sm:$0xff]
    %v488 = vld [vmem:[#allocation7 + $0x6c8] sm:$0xff]
    %v489 = vld [vmem:[#allocation7 + $0x6d0] sm:$0xff]
    %v490 = vld [vmem:[#allocation7 + $0x6d8] sm:$0xff]
    %v491 = vld [vmem:[#allocation7 + $0x6e0] sm:$0xff]
    %v492 = vld [vmem:[#allocation7 + $0x6e8] sm:$0xff]
    %v493 = vld [vmem:[#allocation7 + $0x6f0] sm:$0xff]
    %v494 = vld [vmem:[#allocation7 + $0x6f8] sm:$0xff]
    %v495 = vld [vmem:[#allocation7 + $0x700] sm:$0xff]
    %v496 = vld [vmem:[#allocation7 + $0x708] sm:$0xff]
    %v497 = vld [vmem:[#allocation7 + $0x710] sm:$0xff]
    %v498 = vld [vmem:[#allocation7 + $0x718] sm:$0xff]
    %v499 = vld [vmem:[#allocation7 + $0x720] sm:$0xff]
    %v500 = vld [vmem:[#allocation7 + $0x728] sm:$0xff]
    %v501 = vld [vmem:[#allocation7 + $0x730] sm:$0xff]
    %v502 = vld [vmem:[#allocation7 + $0x738] sm:$0xff]
    %v503 = vld [vmem:[#allocation7 + $0x740] sm:$0xff]
    %v504 = vld [vmem:[#allocation7 + $0x748] sm:$0xff]
    %v505 = vld [vmem:[#allocation7 + $0x750] sm:$0xff]
    %v506 = vld [vmem:[#allocation7 + $0x758] sm:$0xff]
    %v507 = vld [vmem:[#allocation7 + $0x760] sm:$0xff]
    %v508 = vld [vmem:[#allocation7 + $0x768] sm:$0xff]
    %v509 = vld [vmem:[#allocation7 + $0x770] sm:$0xff]
    %v510 = vld [vmem:[#allocation7 + $0x778] sm:$0xff]
    %v511 = vld [vmem:[#allocation7 + $0x780] sm:$0xff]
    %v512 = vld [vmem:[#allocation7 + $0x788] sm:$0xff]
    %v513 = vld [vmem:[#allocation7 + $0x790] sm:$0xff]
    %v514 = vld [vmem:[#allocation7 + $0x798] sm:$0xff]
    %v515 = vld [vmem:[#allocation7 + $0x7a0] sm:$0xff]
    %v516 = vld [vmem:[#allocation7 + $0x7a8] sm:$0xff]
    %v517 = vld [vmem:[#allocation7 + $0x7b0] sm:$0xff]
    %v518 = vld [vmem:[#allocation7 + $0x7b8] sm:$0xff]
    %v519 = vld [vmem:[#allocation7 + $0x7c0] sm:$0xff]
    %v520 = vld [vmem:[#allocation7 + $0x7c8] sm:$0xff]
    %v521 = vld [vmem:[#allocation7 + $0x7d0] sm:$0xff]
    %v522 = vld [vmem:[#allocation7 + $0x7d8] sm:$0xff]
    %v523 = vld [vmem:[#allocation7 + $0x7e0] sm:$0xff]
    %v524 = vld [vmem:[#allocation7 + $0x7e8] sm:$0xff]
    %v525 = vld [vmem:[#allocation7 + $0x7f0] sm:$0xff]
    %v526 = vld [vmem:[#allocation7 + $0x7f8] sm:$0xff]
    %527 = vmatprep.subr.mxu0 %v332
    %528 = vmatpush1.msra.mxu0 %v331
    %529 = vmatprep.subr.mxu0 %v328
    %530 = vmatpush1.msra.mxu0 %v327
    %531 = vmatprep.subr.mxu0 %v324
    %532 = vmatpush1.msra.mxu0 %v323
    %533 = vmatprep.subr.mxu0 %v320
    %534 = vmatpush1.msra.mxu0 %v319
    %535 = vmatprep.subr.mxu0 %v316
    %536 = vmatpush1.msra.mxu0 %v315
    %537 = vmatprep.subr.mxu0 %v312
    %538 = vmatpush1.msra.mxu0 %v311
    %539 = vmatprep.subr.mxu0 %v308
    %540 = vmatpush1.msra.mxu0 %v307
    %541 = vmatprep.subr.mxu0 %v304
    %542 = vmatpush1.msra.mxu0 %v303
    %543 = vmatprep.subr.mxu0 %v300
    %544 = vmatpush1.msra.mxu0 %v299
    %545 = vmatprep.subr.mxu0 %v296
    %546 = vmatpush1.msra.mxu0 %v295
    %547 = vmatprep.subr.mxu0 %v292
    %548 = vmatpush1.msra.mxu0 %v291
    %549 = vmatprep.subr.mxu0 %v288
    %550 = vmatpush1.msra.mxu0 %v287
    %551 = vmatprep.subr.mxu0 %v284
    %552 = vmatpush1.msra.mxu0 %v283
    %553 = vmatprep.subr.mxu0 %v280
    %554 = vmatpush1.msra.mxu0 %v279
    %555 = vmatprep.subr.mxu0 %v276
    %556 = vmatpush1.msra.mxu0 %v275
    %557 = vmatprep.subr.mxu0 %v272
    %558 = vmatpush1.msra.mxu0 %v271
    %559 = vmatprep.subr.mxu0 %v396
    %560 = vmatpush2.msra.mxu0 %v395
    %561 = vmatprep.subr.mxu0 %v392
    %562 = vmatpush2.msra.mxu0 %v391
    %563 = vmatprep.subr.mxu0 %v388
    %564 = vmatpush2.msra.mxu0 %v387
    %565 = vmatprep.subr.mxu0 %v384
    %566 = vmatpush2.msra.mxu0 %v383
    %567 = vmatprep.subr.mxu0 %v380
    %568 = vmatpush2.msra.mxu0 %v379
    %569 = vmatprep.subr.mxu0 %v376
    %570 = vmatpush2.msra.mxu0 %v375
    %571 = vmatprep.subr.mxu0 %v372
    %572 = vmatpush2.msra.mxu0 %v371
    %573 = vmatprep.subr.mxu0 %v368
    %574 = vmatpush2.msra.mxu0 %v367
    %575 = vmatprep.subr.mxu0 %v364
    %576 = vmatpush2.msra.mxu0 %v363
    %577 = vmatprep.subr.mxu0 %v360
    %578 = vmatpush2.msra.mxu0 %v359
    %579 = vmatprep.subr.mxu0 %v356
    %580 = vmatpush2.msra.mxu0 %v355
    %581 = vmatprep.subr.mxu0 %v352
    %582 = vmatpush2.msra.mxu0 %v351
    %583 = vmatprep.subr.mxu0 %v348
    %584 = vmatpush2.msra.mxu0 %v347
    %585 = vmatprep.subr.mxu0 %v344
    %586 = vmatpush2.msra.mxu0 %v343
    %587 = vmatprep.subr.mxu0 %v340
    %588 = vmatpush2.msra.mxu0 %v339
    %589 = vmatprep.subr.mxu0 %v336
    %590 = vmatpush2.msra.mxu0 %v335
    %591 = vmatprep.mubr.f32.mxu0 %v267
    %592 = vmatmul.mubr.f32.gmra.mxu0 %v266
    %v593 = vpop.f32.mrf.mxu0
    %v594 = vadd.f32 0.0, %v593
    %v595 = vpop.f32.mrf.mxu0
    %v596 = vadd.f32 0.0, %v595
    %597 = vdwg.mxu0
    %598 = vmatprep.subr.mxu0 %v460
    %599 = vmatpush1.msra.mxu0 %v459
    %600 = vmatprep.subr.mxu0 %v456
    %601 = vmatpush1.msra.mxu0 %v455
    %602 = vmatprep.subr.mxu0 %v452
    %603 = vmatpush1.msra.mxu0 %v451
    %604 = vmatprep.subr.mxu0 %v448
    %605 = vmatpush1.msra.mxu0 %v447
    %606 = vmatprep.subr.mxu0 %v444
    %607 = vmatpush1.msra.mxu0 %v443
    %608 = vmatprep.subr.mxu0 %v440
    %609 = vmatpush1.msra.mxu0 %v439
    %610 = vmatprep.subr.mxu0 %v436
    %611 = vmatpush1.msra.mxu0 %v435
    %612 = vmatprep.subr.mxu0 %v432
    %613 = vmatpush1.msra.mxu0 %v431
    %614 = vmatprep.subr.mxu0 %v428
    %615 = vmatpush1.msra.mxu0 %v427
    %616 = vmatprep.subr.mxu0 %v424
    %617 = vmatpush1.msra.mxu0 %v423
    %618 = vmatprep.subr.mxu0 %v420
    %619 = vmatpush1.msra.mxu0 %v419
    %620 = vmatprep.subr.mxu0 %v416
    %621 = vmatpush1.msra.mxu0 %v415
    %622 = vmatprep.subr.mxu0 %v412
    %623 = vmatpush1.msra.mxu0 %v411
    %624 = vmatprep.subr.mxu0 %v408
    %625 = vmatpush1.msra.mxu0 %v407
    %626 = vmatprep.subr.mxu0 %v404
    %627 = vmatpush1.msra.mxu0 %v403
    %628 = vmatprep.subr.mxu0 %v400
    %629 = vmatpush1.msra.mxu0 %v399
    %630 = vmatprep.subr.mxu0 %v524
    %631 = vmatpush2.msra.mxu0 %v523
    %632 = vmatprep.subr.mxu0 %v520
    %633 = vmatpush2.msra.mxu0 %v519
    %634 = vmatprep.subr.mxu0 %v516
    %635 = vmatpush2.msra.mxu0 %v515
    %636 = vmatprep.subr.mxu0 %v512
    %637 = vmatpush2.msra.mxu0 %v511
    %638 = vmatprep.subr.mxu0 %v508
    %639 = vmatpush2.msra.mxu0 %v507
    %640 = vmatprep.subr.mxu0 %v504
    %641 = vmatpush2.msra.mxu0 %v503
    %642 = vmatprep.subr.mxu0 %v500
    %643 = vmatpush2.msra.mxu0 %v499
    %644 = vmatprep.subr.mxu0 %v496
    %645 = vmatpush2.msra.mxu0 %v495
    %646 = vmatprep.subr.mxu0 %v492
    %647 = vmatpush2.msra.mxu0 %v491
    %648 = vmatprep.subr.mxu0 %v488
    %649 = vmatpush2.msra.mxu0 %v487
    %650 = vmatprep.subr.mxu0 %v484
    %651 = vmatpush2.msra.mxu0 %v483
    %652 = vmatprep.subr.mxu0 %v480
    %653 = vmatpush2.msra.mxu0 %v479
    %654 = vmatprep.subr.mxu0 %v476
    %655 = vmatpush2.msra.mxu0 %v475
    %656 = vmatprep.subr.mxu0 %v472
    %657 = vmatpush2.msra.mxu0 %v471
    %658 = vmatprep.subr.mxu0 %v468
    %659 = vmatpush2.msra.mxu0 %v467
    %660 = vmatprep.subr.mxu0 %v464
    %661 = vmatpush2.msra.mxu0 %v463
    %662 = vmatprep.mubr.f32.mxu0 %v269
    %663 = vmatmul.mubr.f32.gmra.mxu0 %v268
    %v664 = vpop.f32.mrf.mxu0
    %v665 = vadd.f32 %v594, %v664
    %v666 = vpop.f32.mrf.mxu0
    %v667 = vadd.f32 %v596, %v666
    %668 = vdwg.mxu0
    %669 = vmatprep.subr.mxu0 %v334
    %670 = vmatpush1.msra.mxu0 %v333
    %671 = vmatprep.subr.mxu0 %v330
    %672 = vmatpush1.msra.mxu0 %v329
    %673 = vmatprep.subr.mxu0 %v326
    %674 = vmatpush1.msra.mxu0 %v325
    %675 = vmatprep.subr.mxu0 %v322
    %676 = vmatpush1.msra.mxu0 %v321
    %677 = vmatprep.subr.mxu0 %v318
    %678 = vmatpush1.msra.mxu0 %v317
    %679 = vmatprep.subr.mxu0 %v314
    %680 = vmatpush1.msra.mxu0 %v313
    %681 = vmatprep.subr.mxu0 %v310
    %682 = vmatpush1.msra.mxu0 %v309
    %683 = vmatprep.subr.mxu0 %v306
    %684 = vmatpush1.msra.mxu0 %v305
    %685 = vmatprep.subr.mxu0 %v302
    %686 = vmatpush1.msra.mxu0 %v301
    %687 = vmatprep.subr.mxu0 %v298
    %688 = vmatpush1.msra.mxu0 %v297
    %689 = vmatprep.subr.mxu0 %v294
    %690 = vmatpush1.msra.mxu0 %v293
    %691 = vmatprep.subr.mxu0 %v290
    %692 = vmatpush1.msra.mxu0 %v289
    %693 = vmatprep.subr.mxu0 %v286
    %694 = vmatpush1.msra.mxu0 %v285
    %695 = vmatprep.subr.mxu0 %v282
    %696 = vmatpush1.msra.mxu0 %v281
    %697 = vmatprep.subr.mxu0 %v278
    %698 = vmatpush1.msra.mxu0 %v277
    %699 = vmatprep.subr.mxu0 %v274
    %700 = vmatpush1.msra.mxu0 %v273
    %701 = vmatprep.subr.mxu0 %v398
    %702 = vmatpush2.msra.mxu0 %v397
    %703 = vmatprep.subr.mxu0 %v394
    %704 = vmatpush2.msra.mxu0 %v393
    %705 = vmatprep.subr.mxu0 %v390
    %706 = vmatpush2.msra.mxu0 %v389
    %707 = vmatprep.subr.mxu0 %v386
    %708 = vmatpush2.msra.mxu0 %v385
    %709 = vmatprep.subr.mxu0 %v382
    %710 = vmatpush2.msra.mxu0 %v381
    %711 = vmatprep.subr.mxu0 %v378
    %712 = vmatpush2.msra.mxu0 %v377
    %713 = vmatprep.subr.mxu0 %v374
    %714 = vmatpush2.msra.mxu0 %v373
    %715 = vmatprep.subr.mxu0 %v370
    %716 = vmatpush2.msra.mxu0 %v369
    %717 = vmatprep.subr.mxu0 %v366
    %718 = vmatpush2.msra.mxu0 %v365
    %719 = vmatprep.subr.mxu0 %v362
    %720 = vmatpush2.msra.mxu0 %v361
    %721 = vmatprep.subr.mxu0 %v358
    %722 = vmatpush2.msra.mxu0 %v357
    %723 = vmatprep.subr.mxu0 %v354
    %724 = vmatpush2.msra.mxu0 %v353
    %725 = vmatprep.subr.mxu0 %v350
    %726 = vmatpush2.msra.mxu0 %v349
    %727 = vmatprep.subr.mxu0 %v346
    %728 = vmatpush2.msra.mxu0 %v345
    %729 = vmatprep.subr.mxu0 %v342
    %730 = vmatpush2.msra.mxu0 %v341
    %731 = vmatprep.subr.mxu0 %v338
    %732 = vmatpush2.msra.mxu0 %v337
    %733 = vmatprep.mubr.f32.mxu0 %v267
    %734 = vmatmul.mubr.f32.gmra.mxu0 %v266
    %v735 = vpop.f32.mrf.mxu0
    %v736 = vadd.f32 0.0, %v735
    %v737 = vpop.f32.mrf.mxu0
    %v738 = vadd.f32 0.0, %v737
    %739 = vdwg.mxu0
    %740 = vmatprep.subr.mxu0 %v462
    %741 = vmatpush1.msra.mxu0 %v461
    %742 = vmatprep.subr.mxu0 %v458
    %743 = vmatpush1.msra.mxu0 %v457
    %744 = vmatprep.subr.mxu0 %v454
    %745 = vmatpush1.msra.mxu0 %v453
    %746 = vmatprep.subr.mxu0 %v450
    %747 = vmatpush1.msra.mxu0 %v449
    %748 = vmatprep.subr.mxu0 %v446
    %749 = vmatpush1.msra.mxu0 %v445
    %750 = vmatprep.subr.mxu0 %v442
    %751 = vmatpush1.msra.mxu0 %v441
    %752 = vmatprep.subr.mxu0 %v438
    %753 = vmatpush1.msra.mxu0 %v437
    %754 = vmatprep.subr.mxu0 %v434
    %755 = vmatpush1.msra.mxu0 %v433
    %756 = vmatprep.subr.mxu0 %v430
    %757 = vmatpush1.msra.mxu0 %v429
    %758 = vmatprep.subr.mxu0 %v426
    %759 = vmatpush1.msra.mxu0 %v425
    %760 = vmatprep.subr.mxu0 %v422
    %761 = vmatpush1.msra.mxu0 %v421
    %762 = vmatprep.subr.mxu0 %v418
    %763 = vmatpush1.msra.mxu0 %v417
    %764 = vmatprep.subr.mxu0 %v414
    %765 = vmatpush1.msra.mxu0 %v413
    %766 = vmatprep.subr.mxu0 %v410
    %767 = vmatpush1.msra.mxu0 %v409
    %768 = vmatprep.subr.mxu0 %v406
    %769 = vmatpush1.msra.mxu0 %v405
    %770 = vmatprep.subr.mxu0 %v402
    %771 = vmatpush1.msra.mxu0 %v401
    %772 = vmatprep.subr.mxu0 %v526
    %773 = vmatpush2.msra.mxu0 %v525
    %774 = vmatprep.subr.mxu0 %v522
    %775 = vmatpush2.msra.mxu0 %v521
    %776 = vmatprep.subr.mxu0 %v518
    %777 = vmatpush2.msra.mxu0 %v517
    %778 = vmatprep.subr.mxu0 %v514
    %779 = vmatpush2.msra.mxu0 %v513
    %780 = vmatprep.subr.mxu0 %v510
    %781 = vmatpush2.msra.mxu0 %v509
    %782 = vmatprep.subr.mxu0 %v506
    %783 = vmatpush2.msra.mxu0 %v505
    %784 = vmatprep.subr.mxu0 %v502
    %785 = vmatpush2.msra.mxu0 %v501
    %786 = vmatprep.subr.mxu0 %v498
    %787 = vmatpush2.msra.mxu0 %v497
    %788 = vmatprep.subr.mxu0 %v494
    %789 = vmatpush2.msra.mxu0 %v493
    %790 = vmatprep.subr.mxu0 %v490
    %791 = vmatpush2.msra.mxu0 %v489
    %792 = vmatprep.subr.mxu0 %v486
    %793 = vmatpush2.msra.mxu0 %v485
    %794 = vmatprep.subr.mxu0 %v482
    %795 = vmatpush2.msra.mxu0 %v481
    %796 = vmatprep.subr.mxu0 %v478
    %797 = vmatpush2.msra.mxu0 %v477
    %798 = vmatprep.subr.mxu0 %v474
    %799 = vmatpush2.msra.mxu0 %v473
    %800 = vmatprep.subr.mxu0 %v470
    %801 = vmatpush2.msra.mxu0 %v469
    %802 = vmatprep.subr.mxu0 %v466
    %803 = vmatpush2.msra.mxu0 %v465
    %804 = vmatprep.mubr.f32.mxu0 %v269
    %805 = vmatmul.mubr.f32.gmra.mxu0 %v268
    %v806 = vpop.f32.mrf.mxu0
    %v807 = vadd.f32 %v736, %v806
    %v808 = vpop.f32.mrf.mxu0
    %v809 = vadd.f32 %v738, %v808
    %810 = vdwg.mxu0
    %v815 = vcombine.low %v665, %v667
    %v816 = vcombine.low %v807, %v809
    %v818 = vunpack.c.l.s4 1983009808
    %v819 = vunpack.c.0.s8 %v818
    %v820 = vlaneseq
    %v821 = vshrl.u32 %v820, 7
    %v822 = vsub.s32 %v819, %v821
    %v823 = vrot.slane %v815, %v822
    %v825 = vunpack.c.l.s4 1983009808
    %v826 = vunpack.c.0.s8 %v825
    %v827 = vlaneseq
    %v828 = vshrl.u32 %v827, 7
    %v829 = vsub.s32 %v826, %v828
    %v830 = vrot.slane %v816, %v829
    %v831 = vcombine.low %v823, %v830
    %v833 = vadd.f32 %v270, %v831
    %834 = vst [vmem:[#allocation8] sm:$0xff] %v833
    // Predicated region
    $region30: #{tpu_custom_call.1} parent=1 // pred_check
      _
    $region31: #{tpu_custom_call.1} parent=1 // pred_check_branch
      %836 = sbr.rel (0) target = $region33
    $region32: #{tpu_custom_call.1} parent=1 // pred_region
      %s838 = ssub.s32 128, 128
      %839 = vsyncadd [#allocation4], %s838
      %s841 = sshll.u32 [#allocation8], 4
      %s842 = int_to_ptr.vmem [resolvable:$true] %s841
      %844 = dma.vmem_to_hbm [thread:$0]  %s842, 128, %s3, [#allocation4]
    $region33: #{tpu_custom_call.1} parent=1 // pred_fallthru
      _
    // Predicated region
    $region34: #{tpu_custom_call.1} parent=1 // pred_check
      _
    $region35: #{tpu_custom_call.1} parent=1 // pred_check_branch
      %846 = sbr.rel (0) target = $region37
    $region36: #{tpu_custom_call.1} parent=1 // pred_region
      %847 = dma.done [#allocation4], 128
    $region37: #{tpu_custom_call.1} parent=1 // pred_fallthru
      _
    %848 = vsyncpa [#allocation3], 1
    %849 = vsyncpa [#allocation6], 1
    %850 = vsyncpa [#allocation4], 1

</llo_original>
